<compile_context>
chip_gen: v6e
topology: v6e:2x2x1
jax: 0.10.0
libtpu: 0.0.40
codegen_flags: <defaults>
</compile_context>

<pallas_src>
import jax
import jax.numpy as jnp
from jax.experimental import pallas as pl
from jax.experimental.pallas import tpu as pltpu

EPS = 1e-5
LANE = 128
ROW_ALIGN = 16                # bf16 sublane packing: keep row tiles 16-aligned
DEFAULT_ROW_TILE = 1024       # rows per grid step (bf16 activations, f32 outputs)
MIN_SPLIT_ROWS = 1024         # force >= 2 grid steps above this (v7x dual TC)


def _round_up(x, m):
    return (x + m - 1) // m * m


def _pad2(x, rows, cols):
    return jnp.pad(x, ((0, rows - x.shape[0]), (0, cols - x.shape[1])))


def _choose_tile(n, max_tile=DEFAULT_ROW_TILE):
    """Balanced row tiling: minimal tail padding; >=2 steps for large N (v7x)."""
    n_al = _round_up(max(n, ROW_ALIGN), ROW_ALIGN)
    num_steps = pl.cdiv(n_al, max_tile)
    if n_al >= MIN_SPLIT_ROWS:
        num_steps = max(num_steps, 2)
    tile = _round_up(pl.cdiv(n_al, num_steps), ROW_ALIGN)
    return tile * num_steps, tile


# ----------------------------------------------------------------------------
# Kernel: 2-layer MLP (BN folded into W/b), swish = x * sigmoid(x)
# ----------------------------------------------------------------------------
def _mlp2_kernel(x_ref, w1_ref, b1_ref, w2_ref, b2_ref, out_ref):
    # x/W1/W2 are bf16 (MXU-native); accumulate in f32; bias + swish in f32
    # (v5e-safe: no bf16 VPU/EUP there).
    h = jnp.dot(x_ref[...], w1_ref[...], preferred_element_type=jnp.float32)
    h = h + b1_ref[...]
    h = h * jax.nn.sigmoid(h)                     # MemoryEfficientSwish
    o = jnp.dot(h.astype(jnp.bfloat16), w2_ref[...],
                preferred_element_type=jnp.float32)
    o = o + b2_ref[...]
    o = o * jax.nn.sigmoid(o)
    out_ref[...] = o.astype(out_ref.dtype)


# ----------------------------------------------------------------------------
# pallas_call wrapper (shared by node and edge paths)
# ----------------------------------------------------------------------------
def _run_mlp2(x, kp, *, max_tile=DEFAULT_ROW_TILE):
    """x: [n, d_in] float. Returns [n, kp['d_out']] f32."""
    n, d_in = x.shape
    d_in_p, h_p = kp["w1"].shape
    d_out_p = kp["w2"].shape[1]
    padded_n, tile = _choose_tile(n, max_tile)
    grid = (padded_n // tile,)

    # Zero-pad rows/lanes once, then cast to bf16 (halves HBM->VMEM read bytes).
    x_p = _pad2(x.astype(jnp.float32), padded_n, d_in_p).astype(jnp.bfloat16)

    # VMEM budget: activation/output tiles double-buffered, weights single-
    # buffered (Buffered(1)), plus headroom for f32 temporaries / compiler scratch.
    in_tile_b = tile * d_in_p * 2
    out_tile_b = tile * d_out_p * 4
    weight_b = (d_in_p * h_p + h_p * d_out_p) * 2 + (h_p + d_out_p) * 4
    scratch_b = tile * (h_p + d_out_p) * 4
    vmem_limit = int(min(max(2 * (2 * (in_tile_b + out_tile_b) + weight_b + scratch_b),
                             8 << 20), 64 << 20))

    flops = 2 * padded_n * (d_in_p * h_p + h_p * d_out_p)
    transcendentals = padded_n * (h_p + d_out_p)
    bytes_accessed = padded_n * (2 * d_in_p + 4 * d_out_p) + weight_b

    def row_spec(width):
        return pl.BlockSpec((tile, width), lambda i: (i, 0))

    def const_spec(shape):
        # Constant index_map -> VMEM-resident; single buffer is enough.
        return pl.BlockSpec(shape, lambda i: (0, 0),
                            pipeline_mode=pl.Buffered(1))

    out_p = pl.pallas_call(
        _mlp2_kernel,
        out_shape=jax.ShapeDtypeStruct((padded_n, d_out_p), jnp.float32),
        grid=grid,
        in_specs=[
            row_spec(d_in_p),                 # activation tiles (pipelined)
            const_spec((d_in_p, h_p)),        # W1 (bf16)
            const_spec((1, h_p)),             # b1 (f32)
            const_spec((h_p, d_out_p)),       # W2 (bf16)
            const_spec((1, d_out_p)),         # b2 (f32)
        ],
        out_specs=row_spec(d_out_p),
        compiler_params=pltpu.CompilerParams(
            dimension_semantics=("parallel",),
            vmem_limit_bytes=vmem_limit),
        cost_estimate=pl.CostEstimate(flops=flops,
                                      transcendentals=transcendentals,
                                      bytes_accessed=bytes_accessed),
    )(x_p, kp["w1"], kp["b1"], kp["w2"], kp["b2"])
    return out_p[:n, :kp["d_out"]]


# ----------------------------------------------------------------------------
# Parameter construction (mirrors MLP(input, [hidden], output), fresh BN, eval)
# ----------------------------------------------------------------------------
def _make_mlp_params(key, input_dim, hidden_dim, output_dim):
    k1, k2, k3, k4 = jax.random.split(key, 4)
    bnd1 = 1.0 / jnp.sqrt(jnp.float32(input_dim))
    bnd2 = 1.0 / jnp.sqrt(jnp.float32(hidden_dim))
    w1 = jax.random.uniform(k1, (input_dim, hidden_dim), jnp.float32, -bnd1, bnd1)
    b1 = jax.random.uniform(k2, (1, hidden_dim), jnp.float32, -bnd1, bnd1)
    w2 = jax.random.uniform(k3, (hidden_dim, output_dim), jnp.float32, -bnd2, bnd2)
    b2 = jax.random.uniform(k4, (1, output_dim), jnp.float32, -bnd2, bnd2)

    # Fresh BatchNorm1d in eval mode: gamma=1, beta=0, running_mean=0, running_var=1.
    def bn_fold(dim):
        scale = jnp.ones((1, dim), jnp.float32) / jnp.sqrt(1.0 + EPS)
        shift = jnp.zeros((1, dim), jnp.float32)
        return scale, shift

    s1, sh1 = bn_fold(hidden_dim)
    s2, sh2 = bn_fold(output_dim)
    return {"w1": w1, "b1": b1, "w2": w2, "b2": b2,
            "s1": s1, "sh1": sh1, "s2": s2, "sh2": sh2}


def _fold_bn(raw):
    # Eval-mode BN folded into Linear: W' = W*scale, b' = b*scale + shift.
    w1f = raw["w1"] * raw["s1"]
    b1f = raw["b1"] * raw["s1"] + raw["sh1"]
    w2f = raw["w2"] * raw["s2"]
    b2f = raw["b2"] * raw["s2"] + raw["sh2"]
    return w1f, b1f, w2f, b2f


def prepare_kernel_params(raw):
    """Fold BN, zero-pad feature dims to 128 lanes, cast weights to bf16."""
    w1f, b1f, w2f, b2f = _fold_bn(raw)
    d_in, h = w1f.shape
    d_out = w2f.shape[1]
    d_in_p, h_p, d_out_p = (_round_up(d, LANE) for d in (d_in, h, d_out))
    return {
        "w1": _pad2(w1f, d_in_p, h_p).astype(jnp.bfloat16),
        "b1": _pad2(b1f, 1, h_p),                           # f32
        "w2": _pad2(w2f, h_p, d_out_p).astype(jnp.bfloat16),
        "b2": _pad2(b2f, 1, d_out_p),                       # f32
        "d_out": d_out,
    }


# ----------------------------------------------------------------------------
# GCN_Layer forward
# ----------------------------------------------------------------------------
def gcn_layer_forward(node_kparams, edge_kparams, embed_objects, embed_predicates, edges):
    """embed_objects: [n_obj, D], embed_predicates: [n_pred, P], edges: [n_pred, 2] int32."""
    n_pred = embed_predicates.shape[0]
    if n_pred > 0:
        s_idx = edges[:, 0]
        o_idx = edges[:, 1]
        # Gather + concat produce ONE packed [n_pred, 2D+P] stream (padded once
        # to 128 lanes inside _run_mlp2) feeding the kernel.
        # TODO(synk): in-kernel row gather (scalar-prefetch + manual DMA) would
        # avoid materializing this concat in HBM entirely.
        edge_input = jnp.concatenate(
            (jnp.take(embed_objects, s_idx, axis=0),
             embed_predicates,
             jnp.take(embed_objects, o_idx, axis=0)), axis=1)
        new_predicates = _run_mlp2(edge_input, edge_kparams)
    else:
        # Mirrors the PyTorch module: empty predicate batch is passed through.
        new_predicates = embed_predicates
    new_objects = _run_mlp2(embed_objects, node_kparams)
    return new_objects, new_predicates


# ----------------------------------------------------------------------------
# Pure-JAX f32 reference (unpadded, unfolded params) for the correctness check
# ----------------------------------------------------------------------------
def _mlp2_ref(x, raw):
    h = x @ raw["w1"] + raw["b1"]
    h = h * raw["s1"] + raw["sh1"]
    h = h * jax.nn.sigmoid(h)
    o = h @ raw["w2"] + raw["b2"]
    o = o * raw["s2"] + raw["sh2"]
    return o * jax.nn.sigmoid(o)


if __name__ == "__main__":
    # Small, TPU-friendly shapes consistent with the module's forward.
    input_dim = 32      # object embedding dim
    pred_dim = 32       # predicate embedding dim
    hidden_dim = 32
    output_dim = 32
    n_object = 16
    n_pred = 8

    key = jax.random.PRNGKey(0)
    k_node, k_edge, k_obj, k_pred, k_edg = jax.random.split(key, 5)

    node_raw = _make_mlp_params(k_node, input_dim, hidden_dim, output_dim)
    edge_raw = _make_mlp_params(k_edge, 2 * input_dim + pred_dim, hidden_dim, output_dim)

    node_kparams = prepare_kernel_params(node_raw)
    edge_kparams = prepare_kernel_params(edge_raw)

    embed_objects = jax.random.normal(k_obj, (n_object, input_dim), jnp.float32)
    embed_predicates = jax.random.normal(k_pred, (n_pred, pred_dim), jnp.float32)
    edges = jax.random.randint(k_edg, (n_pred, 2), 0, n_object, jnp.int32)

    new_objects, new_predicates = gcn_layer_forward(
        node_kparams, edge_kparams, embed_objects, embed_predicates, edges)
    jax.block_until_ready((new_objects, new_predicates))

    # Reference check (plain JAX f32, original un-padded/un-folded parameters).
    s_idx, o_idx = edges[:, 0], edges[:, 1]
    edge_input = jnp.concatenate(
        (embed_objects[s_idx], embed_predicates, embed_objects[o_idx]), axis=1)
    ref_objects = _mlp2_ref(embed_objects, node_raw)
    ref_predicates = _mlp2_ref(edge_input, edge_raw)

    assert new_objects.shape == (n_object, output_dim)
    assert new_predicates.shape == (n_pred, output_dim)
    # bf16 MXU operands -> loosened tolerance vs. the f32 reference.
    assert jnp.allclose(new_objects, ref_objects, atol=2e-2, rtol=2e-2)
    assert jnp.allclose(new_predicates, ref_predicates, atol=2e-2, rtol=2e-2)

    print("KERNEL_OK")
</pallas_src>

<mosaic_0001>
module attributes {stable_mosaic.version = 11 : i64} {
  func.func @_mlp2_kernel(%arg0: i32, %arg1: memref<16x128xbf16, #tpu.memory_space<vmem>>, %arg2: memref<128x128xbf16, #tpu.memory_space<vmem>>, %arg3: memref<1x128xf32, #tpu.memory_space<vmem>>, %arg4: memref<128x128xbf16, #tpu.memory_space<vmem>>, %arg5: memref<1x128xf32, #tpu.memory_space<vmem>>, %arg6: memref<16x128xf32, #tpu.memory_space<vmem>>) attributes {dimension_semantics = [#tpu.dimension_semantics<parallel>], iteration_bounds = array<i64: 1>, scalar_prefetch = 0 : i64, scratch_operands = 0 : i64, tpu.core_type = #tpu.core_type<tc>, window_params = [{transform_indices = @transform_0, window_bounds = array<i64: 16, 128>}, {pipeline_mode = #tpu.pipeline_mode<synchronous>, transform_indices = @transform_1, window_bounds = array<i64: 128, 128>}, {pipeline_mode = #tpu.pipeline_mode<synchronous>, transform_indices = @transform_2, window_bounds = array<i64: 1, 128>}, {pipeline_mode = #tpu.pipeline_mode<synchronous>, transform_indices = @transform_3, window_bounds = array<i64: 128, 128>}, {pipeline_mode = #tpu.pipeline_mode<synchronous>, transform_indices = @transform_4, window_bounds = array<i64: 1, 128>}, {transform_indices = @transform_5, window_bounds = array<i64: 16, 128>}]} {
    %c0 = arith.constant 0 : index
    %c0_0 = arith.constant 0 : index
    %0 = vector.load %arg1[%c0, %c0_0] : memref<16x128xbf16, #tpu.memory_space<vmem>>, vector<16x128xbf16>
    %c0_1 = arith.constant 0 : index
    %c0_2 = arith.constant 0 : index
    %1 = vector.load %arg2[%c0_1, %c0_2] : memref<128x128xbf16, #tpu.memory_space<vmem>>, vector<128x128xbf16>
    %cst = arith.constant dense<0.000000e+00> : vector<16x128xf32>
    %2 = tpu.matmul %0, %1, %cst {dimension_numbers = #tpu.dot_dimension_numbers<[1], [0], [0], [1], [0, 0, 1, 1], [], []>} : vector<16x128xbf16>, vector<128x128xbf16>, vector<16x128xf32> -> vector<16x128xf32>
    %c0_3 = arith.constant 0 : index
    %c0_4 = arith.constant 0 : index
    %3 = vector.load %arg3[%c0_3, %c0_4] : memref<1x128xf32, #tpu.memory_space<vmem>>, vector<1x128xf32>
    %4 = vector.broadcast %3 : vector<1x128xf32> to vector<16x128xf32>
    %5 = arith.addf %2, %4 : vector<16x128xf32>
    %6 = arith.negf %5 : vector<16x128xf32>
    %7 = math.exp %6 : vector<16x128xf32>
    %cst_5 = arith.constant 1.000000e+00 : f32
    %8 = vector.broadcast %cst_5 : f32 to vector<16x128xf32>
    %9 = arith.addf %8, %7 : vector<16x128xf32>
    %10 = arith.divf %8, %9 : vector<16x128xf32>
    %11 = arith.mulf %5, %10 : vector<16x128xf32>
    %12 = arith.truncf %11 : vector<16x128xf32> to vector<16x128xbf16>
    %c0_6 = arith.constant 0 : index
    %c0_7 = arith.constant 0 : index
    %13 = vector.load %arg4[%c0_6, %c0_7] : memref<128x128xbf16, #tpu.memory_space<vmem>>, vector<128x128xbf16>
    %cst_8 = arith.constant dense<0.000000e+00> : vector<16x128xf32>
    %14 = tpu.matmul %12, %13, %cst_8 {dimension_numbers = #tpu.dot_dimension_numbers<[1], [0], [0], [1], [0, 0, 1, 1], [], []>} : vector<16x128xbf16>, vector<128x128xbf16>, vector<16x128xf32> -> vector<16x128xf32>
    %c0_9 = arith.constant 0 : index
    %c0_10 = arith.constant 0 : index
    %15 = vector.load %arg5[%c0_9, %c0_10] : memref<1x128xf32, #tpu.memory_space<vmem>>, vector<1x128xf32>
    %16 = vector.broadcast %15 : vector<1x128xf32> to vector<16x128xf32>
    %17 = arith.addf %14, %16 : vector<16x128xf32>
    %18 = arith.negf %17 : vector<16x128xf32>
    %19 = math.exp %18 : vector<16x128xf32>
    %cst_11 = arith.constant 1.000000e+00 : f32
    %20 = vector.broadcast %cst_11 : f32 to vector<16x128xf32>
    %21 = arith.addf %20, %19 : vector<16x128xf32>
    %22 = arith.divf %20, %21 : vector<16x128xf32>
    %23 = arith.mulf %17, %22 : vector<16x128xf32>
    %c0_12 = arith.constant 0 : index
    %c0_13 = arith.constant 0 : index
    %24 = vector.load %arg6[%c0_12, %c0_13] : memref<16x128xf32, #tpu.memory_space<vmem>>, vector<16x128xf32>
    tpu.vector_store %arg6[%c0_12, %c0_13], %23 {strides = array<i32>} : memref<16x128xf32, #tpu.memory_space<vmem>>, vector<16x128xf32>,
    return
  }
  func.func @transform_0(%arg0: i32) -> (i32, i32) {
    %c0_i32 = arith.constant 0 : i32
    %c0_i32_0 = arith.constant 0 : i32
    return %arg0, %c0_i32 : i32, i32
  }
  func.func @transform_1(%arg0: i32) -> (i32, i32) {
    %c0_i32 = arith.constant 0 : i32
    %c0_i32_0 = arith.constant 0 : i32
    %c0_i32_1 = arith.constant 0 : i32
    return %c0_i32, %c0_i32_0 : i32, i32
  }
  func.func @transform_2(%arg0: i32) -> (i32, i32) {
    %c0_i32 = arith.constant 0 : i32
    %c0_i32_0 = arith.constant 0 : i32
    %c0_i32_1 = arith.constant 0 : i32
    return %c0_i32, %c0_i32_0 : i32, i32
  }
  func.func @transform_3(%arg0: i32) -> (i32, i32) {
    %c0_i32 = arith.constant 0 : i32
    %c0_i32_0 = arith.constant 0 : i32
    %c0_i32_1 = arith.constant 0 : i32
    return %c0_i32, %c0_i32_0 : i32, i32
  }
  func.func @transform_4(%arg0: i32) -> (i32, i32) {
    %c0_i32 = arith.constant 0 : i32
    %c0_i32_0 = arith.constant 0 : i32
    %c0_i32_1 = arith.constant 0 : i32
    return %c0_i32, %c0_i32_0 : i32, i32
  }
  func.func @transform_5(%arg0: i32) -> (i32, i32) {
    %c0_i32 = arith.constant 0 : i32
    %c0_i32_0 = arith.constant 0 : i32
    return %arg0, %c0_i32 : i32, i32
  }
}

</mosaic_0001>

<llo_original>
// kernel: tpu_custom_call.1
$region0: #{tpu_custom_call.1}
  #allocation0 [shape = 'u32[]', space=smem, size = 0x4, offset = 0x4, fixed_abs, tag = 'smem constant byte address 0x4 - core index']
  #allocation1 [shape = 'u32[144,128]{1,0:T(1,128)}', space=vmem, size = 0x12000, scoped, tag = 'internal scratch']
  %s0 = inlined_call_operand.hbm [shape: bf16[16,128], index: 0, kind: input, shape index: {}]
  %s1 = inlined_call_operand.hbm [shape: bf16[128,128], index: 1, kind: input, shape index: {}]
  %s2 = inlined_call_operand.vmem [shape: f32[1,128], index: 2, kind: input, shape index: {}]
  %s3 = inlined_call_operand.hbm [shape: bf16[128,128], index: 3, kind: input, shape index: {}]
  %s4 = inlined_call_operand.vmem [shape: f32[1,128], index: 4, kind: input, shape index: {}]
  %s5 = inlined_call_operand.hbm [shape: f32[16,128], index: 5, kind: output, shape index: {}]
  %s6 = sld [smem:[#allocation0]]
  $region42: #{tpu_custom_call.1} parent=0
    _
  %s8 = ssub.s32 1, %s6
  %s9 = scalar_select 0, %s8, %s6
  $region1: #{tpu_custom_call.1} parent=0
    #allocation2 [shape = 'u8[4096]{0}', space=vmem, size = 0x1000, scoped, tag = 'input window, operand 0, single buffered']
    #allocation3 [shape = 's32[1]{0}', space=sflag, size = 0x4, scoped, tag = 'scoped memory for tpu_custom_call.1']
    #allocation4 [shape = 's32[1]{0}', space=sflag, size = 0x4, scoped, tag = 'scoped memory for tpu_custom_call.1']
    #allocation5 [shape = 'u8[32768]{0}', space=vmem, size = 0x8000, scoped, tag = 'input window, operand 1, single buffered']
    #allocation6 [shape = 's32[1]{0}', space=sflag, size = 0x4, scoped, tag = 'scoped memory for tpu_custom_call.1']
    #allocation7 [shape = 'u8[32768]{0}', space=vmem, size = 0x8000, scoped, tag = 'input window, operand 3, single buffered']
    #allocation8 [shape = 'u8[8192]{0}', space=vmem, size = 0x2000, scoped, tag = 'output window, operand 0, single buffered']
    %10 = vsyncpa [#allocation3], 0
    %11 = vsyncpa [#allocation6], 0
    %12 = vsyncpa [#allocation4], 0
    // Predicated region
    $region2: #{tpu_custom_call.1} parent=1 // pred_check
      _
    $region3: #{tpu_custom_call.1} parent=1 // pred_check_branch
      %14 = sbr.rel (0) target = $region5
    $region4: #{tpu_custom_call.1} parent=1 // pred_region
      %s16 = ssub.s32 128, 128
      %17 = vsyncadd [#allocation3], %s16
      %s18 = sshll.u32 [#allocation2], 4
      %s19 = int_to_ptr.vmem [resolvable:$true] %s18
      %24 = dma.hbm_to_vmem [thread:$0]  %s0, 128, %s19, [#allocation3], 64, 64, 4
    $region5: #{tpu_custom_call.1} parent=1 // pred_fallthru
      _
    // Predicated region
    $region6: #{tpu_custom_call.1} parent=1 // pred_check
      _
    $region7: #{tpu_custom_call.1} parent=1 // pred_check_branch
      %26 = sbr.rel (0) target = $region9
    $region8: #{tpu_custom_call.1} parent=1 // pred_region
      %s28 = ssub.s32 1024, 1024
      %29 = vsyncadd [#allocation6], %s28
      %s30 = sshll.u32 [#allocation5], 4
      %s31 = int_to_ptr.vmem [resolvable:$true] %s30
      %36 = dma.hbm_to_vmem [thread:$0]  %s1, 1024, %s31, [#allocation6], 64, 64, 4
    $region9: #{tpu_custom_call.1} parent=1 // pred_fallthru
      _
    // Predicated region
    $region10: #{tpu_custom_call.1} parent=1 // pred_check
      _
    $region11: #{tpu_custom_call.1} parent=1 // pred_check_branch
      %38 = sbr.rel (0) target = $region13
    $region12: #{tpu_custom_call.1} parent=1 // pred_region
      _
    $region13: #{tpu_custom_call.1} parent=1 // pred_fallthru
      _
    // Predicated region
    $region14: #{tpu_custom_call.1} parent=1 // pred_check
      _
    $region15: #{tpu_custom_call.1} parent=1 // pred_check_branch
      %40 = sbr.rel (0) target = $region17
    $region16: #{tpu_custom_call.1} parent=1 // pred_region
      %s42 = ssub.s32 1024, 1024
      %43 = vsyncadd [#allocation6], %s42
      %s44 = sshll.u32 [#allocation7], 4
      %s45 = int_to_ptr.vmem [resolvable:$true] %s44
      %50 = dma.hbm_to_vmem [thread:$0]  %s3, 1024, %s45, [#allocation6], 64, 64, 4
    $region17: #{tpu_custom_call.1} parent=1 // pred_fallthru
      _
    // Predicated region
    $region18: #{tpu_custom_call.1} parent=1 // pred_check
      _
    $region19: #{tpu_custom_call.1} parent=1 // pred_check_branch
      %52 = sbr.rel (0) target = $region21
    $region20: #{tpu_custom_call.1} parent=1 // pred_region
      _
    $region21: #{tpu_custom_call.1} parent=1 // pred_fallthru
      _
    // Predicated region
    $region22: #{tpu_custom_call.1} parent=1 // pred_check
      _
    $region23: #{tpu_custom_call.1} parent=1 // pred_check_branch
      %54 = sbr.rel (0) target = $region25
    $region24: #{tpu_custom_call.1} parent=1 // pred_region
      %55 = dma.done [#allocation3], 128
    $region25: #{tpu_custom_call.1} parent=1 // pred_fallthru
      _
    // Predicated region
    $region26: #{tpu_custom_call.1} parent=1 // pred_check
      _
    $region27: #{tpu_custom_call.1} parent=1 // pred_check_branch
      %57 = sbr.rel (0) target = $region29
    $region28: #{tpu_custom_call.1} parent=1 // pred_region
      %58 = dma.done [#allocation6], 1024
    $region29: #{tpu_custom_call.1} parent=1 // pred_fallthru
      _
    // Predicated region
    $region30: #{tpu_custom_call.1} parent=1 // pred_check
      _
    $region31: #{tpu_custom_call.1} parent=1 // pred_check_branch
      %60 = sbr.rel (0) target = $region33
    $region32: #{tpu_custom_call.1} parent=1 // pred_region
      %61 = dma.done [#allocation6], 1024
    $region33: #{tpu_custom_call.1} parent=1 // pred_fallthru
      _
    %v63 = vld [vmem:[#allocation2] sm:$0xf]
    %v64 = vld [vmem:[#allocation2 + $0x4] sm:$0xf]
    %v65 = vld [vmem:[#allocation5] sm:$0xf]
    %v66 = vld [vmem:[#allocation5 + $0x4] sm:$0xf]
    %v67 = vld [vmem:[#allocation5 + $0x8] sm:$0xf]
    %v68 = vld [vmem:[#allocation5 + $0xc] sm:$0xf]
    %v69 = vld [vmem:[#allocation5 + $0x10] sm:$0xf]
    %v70 = vld [vmem:[#allocation5 + $0x14] sm:$0xf]
    %v71 = vld [vmem:[#allocation5 + $0x18] sm:$0xf]
    %v72 = vld [vmem:[#allocation5 + $0x1c] sm:$0xf]
    %v73 = vld [vmem:[#allocation5 + $0x20] sm:$0xf]
    %v74 = vld [vmem:[#allocation5 + $0x24] sm:$0xf]
    %v75 = vld [vmem:[#allocation5 + $0x28] sm:$0xf]
    %v76 = vld [vmem:[#allocation5 + $0x2c] sm:$0xf]
    %v77 = vld [vmem:[#allocation5 + $0x30] sm:$0xf]
    %v78 = vld [vmem:[#allocation5 + $0x34] sm:$0xf]
    %v79 = vld [vmem:[#allocation5 + $0x38] sm:$0xf]
    %v80 = vld [vmem:[#allocation5 + $0x3c] sm:$0xf]
    %v81 = vld [vmem:[%s2] sm:$0x1]
    %v83 = vlaneseq
    %v84 = vshrl.u32 %v83, 7
    %v85 = vsub.s32 0, %v84
    %v86 = vrot.slane %v81, %v85
    %v90 = vunpack.c.l.b16 %v63
    %v91 = vunpack.c.l.b16 %v64
    %v92 = vpack.c.b16 %v91, %v90
    %v110 = vunpack.c.l.b16 %v65
    %v111 = vunpack.c.l.b16 %v66
    %v112 = vunpack.c.l.b16 %v67
    %v113 = vunpack.c.l.b16 %v68
    %v114 = vunpack.c.l.b16 %v69
    %v115 = vunpack.c.l.b16 %v70
    %v116 = vunpack.c.l.b16 %v71
    %v117 = vunpack.c.l.b16 %v72
    %v118 = vunpack.c.l.b16 %v73
    %v119 = vunpack.c.l.b16 %v74
    %v120 = vunpack.c.l.b16 %v75
    %v121 = vunpack.c.l.b16 %v76
    %v122 = vunpack.c.l.b16 %v77
    %v123 = vunpack.c.l.b16 %v78
    %v124 = vunpack.c.l.b16 %v79
    %v125 = vunpack.c.l.b16 %v80
    %v126 = vpack.c.b16 %v111, %v110
    %v127 = vpack.c.b16 %v113, %v112
    %v128 = vpack.c.b16 %v115, %v114
    %v129 = vpack.c.b16 %v117, %v116
    %v130 = vpack.c.b16 %v119, %v118
    %v131 = vpack.c.b16 %v121, %v120
    %v132 = vpack.c.b16 %v123, %v122
    %v133 = vpack.c.b16 %v125, %v124
    %142 = vmatprep.subr.bf16.mxu0 0
    %143 = vmatpush1.bf16.msra.mxu0 %v133
    %144 = vmatprep.subr.bf16.mxu0 0
    %145 = vmatpush1.bf16.msra.mxu0 %v132
    %146 = vmatprep.subr.bf16.mxu0 0
    %147 = vmatpush1.bf16.msra.mxu0 %v131
    %148 = vmatprep.subr.bf16.mxu0 0
    %149 = vmatpush1.bf16.msra.mxu0 %v130
    %150 = vmatprep.subr.bf16.mxu0 0
    %151 = vmatpush1.bf16.msra.mxu0 %v129
    %152 = vmatprep.subr.bf16.mxu0 0
    %153 = vmatpush1.bf16.msra.mxu0 %v128
    %154 = vmatprep.subr.bf16.mxu0 0
    %155 = vmatpush1.bf16.msra.mxu0 %v127
    %156 = vmatprep.subr.bf16.mxu0 0
    %157 = vmatpush1.bf16.msra.mxu0 %v126
    %158 = vmatprep.subr.bf16.mxu0 0
    %159 = vmatpush2.bf16.msra.mxu0 0
    %160 = vmatprep.subr.bf16.mxu0 0
    %161 = vmatpush2.bf16.msra.mxu0 0
    %162 = vmatprep.subr.bf16.mxu0 0
    %163 = vmatpush2.bf16.msra.mxu0 0
    %164 = vmatprep.subr.bf16.mxu0 0
    %165 = vmatpush2.bf16.msra.mxu0 0
    %166 = vmatprep.subr.bf16.mxu0 0
    %167 = vmatpush2.bf16.msra.mxu0 0
    %168 = vmatprep.subr.bf16.mxu0 0
    %169 = vmatpush2.bf16.msra.mxu0 0
    %170 = vmatprep.subr.bf16.mxu0 0
    %171 = vmatpush2.bf16.msra.mxu0 0
    %172 = vmatprep.subr.bf16.mxu0 0
    %173 = vmatpush2.bf16.msra.mxu0 0
    %174 = vmatprep.mubr.bf16.mxu0 0
    %175 = vmatmul.mubr.bf16.gmra.mxu0 %v92
    %v176 = vpop.f32.mrf.mxu0
    %v177 = vadd.f32 %v86, %v176
    %v178 = vpop.f32.mrf.mxu0
    %v179 = vpop.f32.mrf.mxu0
    %v180 = vadd.f32 %v86, %v179
    %v181 = vpop.f32.mrf.mxu0
    %182 = vdwg.mxu0
    %v183 = vxor.u32 %v177, 2147483648
    %v184 = vxor.u32 %v180, 2147483648
    %v185 = vmul.f32 %v183, 1.442695
    %v186 = vpow.pop %v185
    %v187 = vmul.f32 %v184, 1.442695
    %v188 = vpow.pop %v187
    %v189 = vadd.f32 %v186, 1.0
    %v190 = vadd.f32 %v188, 1.0
    %v191 = vrcp.pop %v189
    %v192 = vmul.f32 1.0, %v191
    %v193 = vrcp.pop %v190
    %v194 = vmul.f32 1.0, %v193
    %v195 = vmul.f32 %v177, %v192
    %v196 = vmul.f32 %v180, %v194
    %v197 = vpack.c.bf16 %v196, %v195
    %v198 = vld [vmem:[#allocation7] sm:$0xf]
    %v199 = vld [vmem:[#allocation7 + $0x4] sm:$0xf]
    %v200 = vld [vmem:[#allocation7 + $0x8] sm:$0xf]
    %v201 = vld [vmem:[#allocation7 + $0xc] sm:$0xf]
    %v202 = vld [vmem:[#allocation7 + $0x10] sm:$0xf]
    %v203 = vld [vmem:[#allocation7 + $0x14] sm:$0xf]
    %v204 = vld [vmem:[#allocation7 + $0x18] sm:$0xf]
    %v205 = vld [vmem:[#allocation7 + $0x1c] sm:$0xf]
    %v206 = vld [vmem:[#allocation7 + $0x20] sm:$0xf]
    %v207 = vld [vmem:[#allocation7 + $0x24] sm:$0xf]
    %v208 = vld [vmem:[#allocation7 + $0x28] sm:$0xf]
    %v209 = vld [vmem:[#allocation7 + $0x2c] sm:$0xf]
    %v210 = vld [vmem:[#allocation7 + $0x30] sm:$0xf]
    %v211 = vld [vmem:[#allocation7 + $0x34] sm:$0xf]
    %v212 = vld [vmem:[#allocation7 + $0x38] sm:$0xf]
    %v213 = vld [vmem:[#allocation7 + $0x3c] sm:$0xf]
    %v214 = vld [vmem:[%s4] sm:$0x1]
    %v216 = vlaneseq
    %v217 = vshrl.u32 %v216, 7
    %v218 = vsub.s32 0, %v217
    %v219 = vrot.slane %v214, %v218
    %v237 = vunpack.c.l.b16 %v198
    %v238 = vunpack.c.l.b16 %v199
    %v239 = vunpack.c.l.b16 %v200
    %v240 = vunpack.c.l.b16 %v201
    %v241 = vunpack.c.l.b16 %v202
    %v242 = vunpack.c.l.b16 %v203
    %v243 = vunpack.c.l.b16 %v204
    %v244 = vunpack.c.l.b16 %v205
    %v245 = vunpack.c.l.b16 %v206
    %v246 = vunpack.c.l.b16 %v207
    %v247 = vunpack.c.l.b16 %v208
    %v248 = vunpack.c.l.b16 %v209
    %v249 = vunpack.c.l.b16 %v210
    %v250 = vunpack.c.l.b16 %v211
    %v251 = vunpack.c.l.b16 %v212
    %v252 = vunpack.c.l.b16 %v213
    %v253 = vpack.c.b16 %v238, %v237
    %v254 = vpack.c.b16 %v240, %v239
    %v255 = vpack.c.b16 %v242, %v241
    %v256 = vpack.c.b16 %v244, %v243
    %v257 = vpack.c.b16 %v246, %v245
    %v258 = vpack.c.b16 %v248, %v247
    %v259 = vpack.c.b16 %v250, %v249
    %v260 = vpack.c.b16 %v252, %v251
    %269 = vmatprep.subr.bf16.mxu0 0
    %270 = vmatpush1.bf16.msra.mxu0 %v260
    %271 = vmatprep.subr.bf16.mxu0 0
    %272 = vmatpush1.bf16.msra.mxu0 %v259
    %273 = vmatprep.subr.bf16.mxu0 0
    %274 = vmatpush1.bf16.msra.mxu0 %v258
    %275 = vmatprep.subr.bf16.mxu0 0
    %276 = vmatpush1.bf16.msra.mxu0 %v257
    %277 = vmatprep.subr.bf16.mxu0 0
    %278 = vmatpush1.bf16.msra.mxu0 %v256
    %279 = vmatprep.subr.bf16.mxu0 0
    %280 = vmatpush1.bf16.msra.mxu0 %v255
    %281 = vmatprep.subr.bf16.mxu0 0
    %282 = vmatpush1.bf16.msra.mxu0 %v254
    %283 = vmatprep.subr.bf16.mxu0 0
    %284 = vmatpush1.bf16.msra.mxu0 %v253
    %285 = vmatprep.subr.bf16.mxu0 0
    %286 = vmatpush2.bf16.msra.mxu0 0
    %287 = vmatprep.subr.bf16.mxu0 0
    %288 = vmatpush2.bf16.msra.mxu0 0
    %289 = vmatprep.subr.bf16.mxu0 0
    %290 = vmatpush2.bf16.msra.mxu0 0
    %291 = vmatprep.subr.bf16.mxu0 0
    %292 = vmatpush2.bf16.msra.mxu0 0
    %293 = vmatprep.subr.bf16.mxu0 0
    %294 = vmatpush2.bf16.msra.mxu0 0
    %295 = vmatprep.subr.bf16.mxu0 0
    %296 = vmatpush2.bf16.msra.mxu0 0
    %297 = vmatprep.subr.bf16.mxu0 0
    %298 = vmatpush2.bf16.msra.mxu0 0
    %299 = vmatprep.subr.bf16.mxu0 0
    %300 = vmatpush2.bf16.msra.mxu0 0
    %301 = vmatprep.mubr.bf16.mxu0 0
    %302 = vmatmul.mubr.bf16.gmra.mxu0 %v197
    %v303 = vpop.f32.mrf.mxu0
    %v304 = vadd.f32 %v219, %v303
    %v305 = vpop.f32.mrf.mxu0
    %v306 = vpop.f32.mrf.mxu0
    %v307 = vadd.f32 %v219, %v306
    %v308 = vpop.f32.mrf.mxu0
    %309 = vdwg.mxu0
    %v310 = vxor.u32 %v304, 2147483648
    %v311 = vxor.u32 %v307, 2147483648
    %v312 = vmul.f32 %v310, 1.442695
    %v313 = vpow.pop %v312
    %v314 = vmul.f32 %v311, 1.442695
    %v315 = vpow.pop %v314
    %v316 = vadd.f32 %v313, 1.0
    %v317 = vadd.f32 %v315, 1.0
    %v318 = vrcp.pop %v316
    %v319 = vmul.f32 1.0, %v318
    %v320 = vrcp.pop %v317
    %v321 = vmul.f32 1.0, %v320
    %v322 = vmul.f32 %v304, %v319
    %v323 = vmul.f32 %v307, %v321
    %324 = vst [vmem:[#allocation8] sm:$0xff] %v322
    %325 = vst [vmem:[#allocation8 + $0x8] sm:$0xff] %v323
    // Predicated region
    $region34: #{tpu_custom_call.1} parent=1 // pred_check
      _
    $region35: #{tpu_custom_call.1} parent=1 // pred_check_branch
      %327 = sbr.rel (0) target = $region37
    $region36: #{tpu_custom_call.1} parent=1 // pred_region
      %s329 = ssub.s32 256, 256
      %330 = vsyncadd [#allocation4], %s329
      %s331 = sshll.u32 [#allocation8], 4
      %s332 = int_to_ptr.vmem [resolvable:$true] %s331
      %337 = dma.vmem_to_hbm [thread:$0]  %s332, 256, %s5, [#allocation4], 128, 128, 8
    $region37: #{tpu_custom_call.1} parent=1 // pred_fallthru
      _
    // Predicated region
    $region38: #{tpu_custom_call.1} parent=1 // pred_check
      _
    $region39: #{tpu_custom_call.1} parent=1 // pred_check_branch
      %339 = sbr.rel (0) target = $region41
    $region40: #{tpu_custom_call.1} parent=1 // pred_region
      %340 = dma.done [#allocation4], 256
    $region41: #{tpu_custom_call.1} parent=1 // pred_fallthru
      _
    %341 = vsyncpa [#allocation3], 1
    %342 = vsyncpa [#allocation6], 1
    %343 = vsyncpa [#allocation4], 1

</llo_original>
